<compile_context>
chip_gen: v7x
topology: tpu7x:2x2x1
jax: 0.10.0
libtpu: 0.0.40
codegen_flags: <defaults>
</compile_context>

<pallas_src>
import functools

import jax
import jax.numpy as jnp
from jax import lax
from jax.experimental import pallas as pl
from jax.experimental.pallas import tpu as pltpu

_LANES = 128
_SUBLANES = 8


def _round_up(x, m):
    return ((x + m - 1) // m) * m


def _focal_loss_kernel(pred_ref, tgt_ref, out_ref, *,
                       alpha, gamma, ignore_index, rows_per_tile,
                       valid_limit, need_valid_mask):
    """One (batch, row-tile) grid step.

    pred_ref: (1, 3, R, 128) logits (any float dtype; bf16 input halves HBM traffic)
    tgt_ref : (1, R, 128)    int32 targets
    out_ref : (1, 8, 128)    per-tile partial sums (vreg-shaped, lane-dense)
    """
    p = pred_ref[0].astype(jnp.float32)            # (3, R, 128)
    x0, x1, x2 = p[0], p[1], p[2]                  # full-vreg (R, 128) slabs
    t = tgt_ref[0]                                 # (R, 128) int32

    # --- softmax #1 over the class axis (FocalLoss.forward), unrolled C=3 ---
    m1 = jnp.maximum(jnp.maximum(x0, x1), x2)
    e0 = jnp.exp(x0 - m1)
    e1 = jnp.exp(x1 - m1)
    e2 = jnp.exp(x2 - m1)
    r1 = pl.reciprocal(e0 + e1 + e2, approx=False)

    # --- ignore_index masking (focal_loss body) ---
    mask = t != ignore_index
    maskf = mask.astype(jnp.float32)
    q0 = e0 * r1 * maskf
    q1 = e1 * r1 * maskf
    q2 = e2 * r1 * maskf

    # --- softmax #2 over the class axis (inside focal_loss) ---
    m2 = jnp.maximum(jnp.maximum(q0, q1), q2)
    f0 = jnp.exp(q0 - m2)
    f1 = jnp.exp(q1 - m2)
    f2 = jnp.exp(q2 - m2)
    r2 = pl.reciprocal(f0 + f1 + f2, approx=False)

    # --- select target-class probability (replaces one-hot + 3x log) ---
    tm = jnp.where(mask, t, 0)
    ft = jnp.where(tm == 0, f0, jnp.where(tm == 1, f1, f2))
    pt = ft * r2

    omp = 1.0 - pt
    g_int = int(gamma)
    if float(gamma) == float(g_int) and 1 <= g_int <= 4:
        focal = omp                                # small integer gamma: VPU multiplies
        for _ in range(g_int - 1):
            focal = focal * omp
    elif float(gamma) == 0.0:
        focal = jnp.ones_like(omp)
    else:
        focal = jnp.power(omp, gamma)              # general-gamma fallback (EUP)

    fl = (alpha * focal) * (-jnp.log(pt))          # (R, 128)

    if need_valid_mask:
        # Zero the contribution of padded pixels (per-batch pixel idx >= H*W).
        i = pl.program_id(1)
        row = lax.broadcasted_iota(jnp.int32, fl.shape, 0)
        lane = lax.broadcasted_iota(jnp.int32, fl.shape, 1)
        flat = (i * rows_per_tile + row) * _LANES + lane
        fl = jnp.where(flat < valid_limit, fl, 0.0)

    # Fold R rows into one (8, 128) vreg with plain VPU adds; the single
    # cross-lane reduction + mean happens once in the wrapper.
    partial = jnp.sum(fl.reshape(rows_per_tile // _SUBLANES, _SUBLANES, _LANES),
                      axis=0)
    out_ref[0] = partial


def focal_loss_pallas(pred, target, *, num_classes=3, alpha=0.25, gamma=2.0,
                      ignore_index=-100, max_rows_per_tile=1024):
    """pred: (B, 3, H, W) float; target: (B, H, W) int. Returns scalar f32 mean loss."""
    assert num_classes == 3, "reference focal_loss hardcodes a 3-channel mask stack"
    B, C, H, W = pred.shape
    assert C == num_classes
    assert target.shape == (B, H, W)
    N = H * W

    rows = -(-N // _LANES)                                   # ceil(N / 128)
    R = min(_round_up(rows, _SUBLANES),
            _round_up(max_rows_per_tile, _SUBLANES))         # rows per tile (mult of 8)
    rows_pad = _round_up(rows, R)
    n_pix_pad = rows_pad * _LANES
    n_row_tiles = rows_pad // R

    # (B, C, H, W) -> (B, C, N) -> pad pixel axis -> (B, C, rows_pad, 128).
    # Batch stays a grid axis (no HBM transpose pass); padded targets use
    # ignore_index and are additionally zeroed by the in-kernel validity mask.
    pred_v = pred.reshape(B, C, N)
    tgt_v = target.reshape(B, N).astype(jnp.int32)
    if n_pix_pad != N:
        pred_v = jnp.pad(pred_v, ((0, 0), (0, 0), (0, n_pix_pad - N)))
        tgt_v = jnp.pad(tgt_v, ((0, 0), (0, n_pix_pad - N)),
                        constant_values=ignore_index)
    pred_v = pred_v.reshape(B, C, rows_pad, _LANES)
    tgt_v = tgt_v.reshape(B, rows_pad, _LANES)

    kernel = functools.partial(
        _focal_loss_kernel,
        alpha=float(alpha), gamma=float(gamma), ignore_index=int(ignore_index),
        rows_per_tile=R, valid_limit=N, need_valid_mask=(n_pix_pad != N))

    partials = pl.pallas_call(
        kernel,
        out_shape=jax.ShapeDtypeStruct((B, n_row_tiles * _SUBLANES, _LANES),
                                       jnp.float32),
        grid_spec=pltpu.PrefetchScalarGridSpec(
            num_scalar_prefetch=0,
            grid=(B, n_row_tiles),
            in_specs=[
                pl.BlockSpec((1, C, R, _LANES), lambda b, i: (b, 0, i, 0)),
                pl.BlockSpec((1, R, _LANES), lambda b, i: (b, i, 0)),
            ],
            out_specs=pl.BlockSpec((1, _SUBLANES, _LANES), lambda b, i: (b, i, 0)),
        ),
        compiler_params=pltpu.CompilerParams(
            dimension_semantics=("parallel", "parallel")),
    )(pred_v, tgt_v)

    # reduction='mean' over the (B, H*W) focal_loss map of the ORIGINAL image.
    return jnp.sum(partials) * (1.0 / float(B * N))


def _focal_loss_ref(pred, target, *, num_classes=3, alpha=0.25, gamma=2.0,
                    ignore_index=-100):
    """Pure-JAX reference mirroring the PyTorch code path (for sanity check)."""
    B, C, H, W = pred.shape
    p = jax.nn.softmax(pred.astype(jnp.float32), axis=1)       # forward()
    p = p.reshape(B, C, -1)
    t = target.reshape(B, -1)
    mask = (t != ignore_index)
    p = p * mask[:, None, :]
    t = jnp.where(mask, t, 0)
    p = jax.nn.softmax(p, axis=1)                              # inside focal_loss()
    onehot = jax.nn.one_hot(t, num_classes, axis=1, dtype=jnp.float32)
    fl = alpha * jnp.power(1.0 - p, gamma) * (-jnp.log(p)) * onehot
    fl = jnp.sum(fl, axis=1)
    return jnp.mean(fl)


if __name__ == "__main__":
    key = jax.random.PRNGKey(0)
    k1, k2, k3 = jax.random.split(key, 3)

    B, C, H, W = 2, 3, 16, 16  # num_classes = 3 (hardcoded in the reference)
    pred = jax.random.normal(k1, (B, C, H, W), dtype=jnp.float32)
    target = jax.random.randint(k2, (B, H, W), 0, C, dtype=jnp.int32)
    # sprinkle some ignore_index positions
    ign = jax.random.bernoulli(k3, 0.1, (B, H, W))
    target = jnp.where(ign, jnp.int32(-100), target)

    loss = focal_loss_pallas(pred, target, num_classes=3, alpha=0.25,
                             gamma=2.0, ignore_index=-100)
    loss = jax.block_until_ready(loss)

    ref = _focal_loss_ref(pred, target, num_classes=3, alpha=0.25,
                          gamma=2.0, ignore_index=-100)
    assert jnp.allclose(loss, ref, rtol=1e-4, atol=1e-6), (loss, ref)

    print("KERNEL_OK")
</pallas_src>

<mosaic_0001>
module attributes {stable_mosaic.version = 11 : i64} {
  func.func @_focal_loss_kernel(%arg0: i32, %arg1: i32, %arg2: memref<1x3x8x128xf32, #tpu.memory_space<vmem>>, %arg3: memref<1x8x128xi32, #tpu.memory_space<vmem>>, %arg4: memref<1x8x128xf32, #tpu.memory_space<vmem>>) attributes {dimension_semantics = [#tpu.dimension_semantics<parallel>, #tpu.dimension_semantics<parallel>], iteration_bounds = array<i64: 2, 1>, scalar_prefetch = 0 : i64, scratch_operands = 0 : i64, tpu.core_type = #tpu.core_type<tc>, window_params = [{transform_indices = @transform_0, window_bounds = array<i64: 1, 3, 8, 128>}, {transform_indices = @transform_1, window_bounds = array<i64: 1, 8, 128>}, {transform_indices = @transform_2, window_bounds = array<i64: 1, 8, 128>}]} {
    %c0 = arith.constant 0 : index
    %c0_0 = arith.constant 0 : index
    %c0_1 = arith.constant 0 : index
    %c0_2 = arith.constant 0 : index
    %0 = vector.load %arg2[%c0, %c0_0, %c0_1, %c0_2] : memref<1x3x8x128xf32, #tpu.memory_space<vmem>>, vector<1x3x8x128xf32>
    %1 = vector.shape_cast %0 : vector<1x3x8x128xf32> to vector<3x8x128xf32>
    %2 = vector.extract_strided_slice %1 {offsets = [0, 0, 0], sizes = [1, 8, 128], strides = [1, 1, 1]} : vector<3x8x128xf32> to vector<1x8x128xf32>
    %3 = vector.shape_cast %2 : vector<1x8x128xf32> to vector<8x128xf32>
    %4 = vector.extract_strided_slice %1 {offsets = [1, 0, 0], sizes = [1, 8, 128], strides = [1, 1, 1]} : vector<3x8x128xf32> to vector<1x8x128xf32>
    %5 = vector.shape_cast %4 : vector<1x8x128xf32> to vector<8x128xf32>
    %6 = vector.extract_strided_slice %1 {offsets = [2, 0, 0], sizes = [1, 8, 128], strides = [1, 1, 1]} : vector<3x8x128xf32> to vector<1x8x128xf32>
    %7 = vector.shape_cast %6 : vector<1x8x128xf32> to vector<8x128xf32>
    %c0_3 = arith.constant 0 : index
    %c0_4 = arith.constant 0 : index
    %c0_5 = arith.constant 0 : index
    %8 = vector.load %arg3[%c0_3, %c0_4, %c0_5] : memref<1x8x128xi32, #tpu.memory_space<vmem>>, vector<1x8x128xi32>
    %9 = vector.shape_cast %8 : vector<1x8x128xi32> to vector<8x128xi32>
    %10 = arith.maximumf %3, %5 : vector<8x128xf32>
    %11 = arith.maximumf %10, %7 : vector<8x128xf32>
    %12 = arith.subf %3, %11 : vector<8x128xf32>
    %13 = math.exp %12 : vector<8x128xf32>
    %14 = arith.subf %5, %11 : vector<8x128xf32>
    %15 = math.exp %14 : vector<8x128xf32>
    %16 = arith.subf %7, %11 : vector<8x128xf32>
    %17 = math.exp %16 : vector<8x128xf32>
    %18 = arith.addf %13, %15 : vector<8x128xf32>
    %19 = arith.addf %18, %17 : vector<8x128xf32>
    %20 = tpu.reciprocal %19 : vector<8x128xf32> -> vector<8x128xf32>
    %c-100_i32 = arith.constant -100 : i32
    %21 = vector.broadcast %c-100_i32 : i32 to vector<8x128xi32>
    %22 = arith.cmpi ne, %9, %21 : vector<8x128xi32>
    %23 = arith.extui %22 : vector<8x128xi1> to vector<8x128xi32>
    %24 = arith.sitofp %23 : vector<8x128xi32> to vector<8x128xf32>
    %25 = arith.mulf %13, %20 : vector<8x128xf32>
    %26 = arith.mulf %25, %24 : vector<8x128xf32>
    %27 = arith.mulf %15, %20 : vector<8x128xf32>
    %28 = arith.mulf %27, %24 : vector<8x128xf32>
    %29 = arith.mulf %17, %20 : vector<8x128xf32>
    %30 = arith.mulf %29, %24 : vector<8x128xf32>
    %31 = arith.maximumf %26, %28 : vector<8x128xf32>
    %32 = arith.maximumf %31, %30 : vector<8x128xf32>
    %33 = arith.subf %26, %32 : vector<8x128xf32>
    %34 = math.exp %33 : vector<8x128xf32>
    %35 = arith.subf %28, %32 : vector<8x128xf32>
    %36 = math.exp %35 : vector<8x128xf32>
    %37 = arith.subf %30, %32 : vector<8x128xf32>
    %38 = math.exp %37 : vector<8x128xf32>
    %39 = arith.addf %34, %36 : vector<8x128xf32>
    %40 = arith.addf %39, %38 : vector<8x128xf32>
    %41 = tpu.reciprocal %40 : vector<8x128xf32> -> vector<8x128xf32>
    %c0_i32 = arith.constant 0 : i32
    %42 = vector.broadcast %c0_i32 : i32 to vector<8x128xi32>
    %43 = arith.select %22, %9, %42 : vector<8x128xi1>, vector<8x128xi32>
    %c0_i32_6 = arith.constant 0 : i32
    %44 = vector.broadcast %c0_i32_6 : i32 to vector<8x128xi32>
    %45 = arith.cmpi eq, %43, %44 : vector<8x128xi32>
    %c1_i32 = arith.constant 1 : i32
    %46 = vector.broadcast %c1_i32 : i32 to vector<8x128xi32>
    %47 = arith.cmpi eq, %43, %46 : vector<8x128xi32>
    %48 = arith.select %47, %36, %38 : vector<8x128xi1>, vector<8x128xf32>
    %49 = arith.select %45, %34, %48 : vector<8x128xi1>, vector<8x128xf32>
    %50 = arith.mulf %49, %41 : vector<8x128xf32>
    %cst = arith.constant 1.000000e+00 : f32
    %51 = vector.broadcast %cst : f32 to vector<8x128xf32>
    %52 = arith.subf %51, %50 : vector<8x128xf32>
    %53 = arith.mulf %52, %52 : vector<8x128xf32>
    %cst_7 = arith.constant 2.500000e-01 : f32
    %54 = vector.broadcast %cst_7 : f32 to vector<8x128xf32>
    %55 = arith.mulf %54, %53 : vector<8x128xf32>
    %56 = math.log %50 : vector<8x128xf32>
    %cst_8 = arith.constant 0.000000e+00 : f32
    %57 = vector.broadcast %cst_8 : f32 to vector<8x128xf32>
    %58 = arith.subf %57, %56 : vector<8x128xf32>
    %59 = arith.mulf %55, %58 : vector<8x128xf32>
    %60 = tpu.iota {dimensions = array<i32: 0>} : vector<8x128xi32>
    %61 = tpu.iota {dimensions = array<i32: 1>} : vector<8x128xi32>
    %c8_i32 = arith.constant 8 : i32
    %62 = arith.muli %arg1, %c8_i32 : i32
    %63 = vector.broadcast %62 : i32 to vector<8x128xi32>
    %64 = arith.addi %63, %60 : vector<8x128xi32>
    %c128_i32 = arith.constant 128 : i32
    %65 = vector.broadcast %c128_i32 : i32 to vector<8x128xi32>
    %66 = arith.muli %64, %65 : vector<8x128xi32>
    %67 = arith.addi %66, %61 : vector<8x128xi32>
    %c256_i32 = arith.constant 256 : i32
    %68 = vector.broadcast %c256_i32 : i32 to vector<8x128xi32>
    %69 = arith.cmpi slt, %67, %68 : vector<8x128xi32>
    %cst_9 = arith.constant 0.000000e+00 : f32
    %70 = vector.broadcast %cst_9 : f32 to vector<8x128xf32>
    %71 = arith.select %69, %59, %70 : vector<8x128xi1>, vector<8x128xf32>
    %72 = vector.shape_cast %71 : vector<8x128xf32> to vector<1x8x128xf32>
    %cst_10 = arith.constant dense<0.000000e+00> : vector<8x128xf32>
    %73 = vector.multi_reduction <add>, %72, %cst_10 [0] : vector<1x8x128xf32> to vector<8x128xf32>
    %c0_11 = arith.constant 0 : index
    %c0_12 = arith.constant 0 : index
    %c0_13 = arith.constant 0 : index
    %74 = vector.load %arg4[%c0_11, %c0_12, %c0_13] : memref<1x8x128xf32, #tpu.memory_space<vmem>>, vector<1x8x128xf32>
    %75 = vector.shape_cast %74 : vector<1x8x128xf32> to vector<8x128xf32>
    %76 = vector.shape_cast %73 : vector<8x128xf32> to vector<1x8x128xf32>
    tpu.vector_store %arg4[%c0_11, %c0_12, %c0_13], %76 {strides = array<i32>} : memref<1x8x128xf32, #tpu.memory_space<vmem>>, vector<1x8x128xf32>,
    return
  }
  func.func @transform_0(%arg0: i32, %arg1: i32) -> (i32, i32, i32, i32) {
    %c0_i32 = arith.constant 0 : i32
    %c0_i32_0 = arith.constant 0 : i32
    %c0_i32_1 = arith.constant 0 : i32
    return %arg0, %c0_i32, %arg1, %c0_i32_0 : i32, i32, i32, i32
  }
  func.func @transform_1(%arg0: i32, %arg1: i32) -> (i32, i32, i32) {
    %c0_i32 = arith.constant 0 : i32
    %c0_i32_0 = arith.constant 0 : i32
    return %arg0, %arg1, %c0_i32 : i32, i32, i32
  }
  func.func @transform_2(%arg0: i32, %arg1: i32) -> (i32, i32, i32) {
    %c0_i32 = arith.constant 0 : i32
    %c0_i32_0 = arith.constant 0 : i32
    return %arg0, %arg1, %c0_i32 : i32, i32, i32
  }
}

</mosaic_0001>

<llo_original>
// kernel: tpu_custom_call.1
$region0: #{tpu_custom_call.1}
  #allocation0 [shape = 'u32[]', space=smem, size = 0x4, offset = 0x4, fixed_abs, tag = 'smem constant byte address 0x4 - core index']
  #allocation1 [shape = 'u32[144,128]{1,0:T(1,128)}', space=vmem, size = 0x12000, scoped, tag = 'internal scratch']
  %s0 = inlined_call_operand.hbm [shape: f32[2,3,8,128], index: 0, kind: input, shape index: {}]
  %s1 = inlined_call_operand.hbm [shape: s32[2,8,128], index: 1, kind: input, shape index: {}]
  %s2 = inlined_call_operand.hbm [shape: f32[2,8,128], index: 2, kind: output, shape index: {}]
  %s3 = sld [smem:[#allocation0]]
  $region49: #{tpu_custom_call.1} parent=0
    _
  %s5 = ssub.s32 1, %s3
  %s6 = scalar_select 0, %s5, %s3
  $region1: #{tpu_custom_call.1} parent=0
    #allocation2 [shape = 'u8[24576]{0}', space=vmem, size = 0x6000, scoped, tag = 'input window, operand 0']
    #allocation3 [shape = 's32[2]{0}', space=sflag, size = 0x8, scoped, tag = 'scoped memory for tpu_custom_call.1']
    #allocation4 [shape = 's32[2]{0}', space=sflag, size = 0x8, scoped, tag = 'scoped memory for tpu_custom_call.1']
    #allocation5 [shape = 'u8[8192]{0}', space=vmem, size = 0x2000, scoped, tag = 'input window, operand 1']
    #allocation6 [shape = 's32[2]{0}', space=sflag, size = 0x8, scoped, tag = 'scoped memory for tpu_custom_call.1']
    #allocation7 [shape = 'u8[8192]{0}', space=vmem, size = 0x2000, scoped, tag = 'output window, operand 0']
    %7 = vsyncpa [#allocation3], 0
    %s8 = scalar_lea.sflag [#allocation3], 1
    %9 = vsyncpa %s8, 0
    %10 = vsyncpa [#allocation6], 0
    %s11 = scalar_lea.sflag [#allocation6], 1
    %12 = vsyncpa %s11, 0
    %13 = vsyncpa [#allocation4], 0
    %s14 = scalar_lea.sflag [#allocation4], 1
    %15 = vsyncpa %s14, 0
    loop: start=0, step=1, limit=4
    $region2: #{tpu_custom_call.1} parent=1 // loop_pre_header
      _
    $region3: #{tpu_custom_call.1} parent=1 // loop_header
      %s17 = sphi 0, %s21
      %p18 = scmp.ge.s32.totalorder %s17, 4
      %s24 = sphi 0, %s36
      %s25 = sphi 0, %s32
      %s26 = sphi 0, %s24
      %s27 = sphi 0, %s25
      %s28 = sphi 0, %s26
      %s29 = sphi 0, %s27
      %s41 = sphi 0, %s43
      %s44 = sphi 0, %s41
      %s45 = sphi 0, %s44
      %s61 = sphi 0, %s45
      %s69 = sphi 0, %s71
      %s72 = sphi 0, %s69
      %s73 = sphi 0, %s72
      %s89 = sphi 0, %s73
      %s97 = sphi 0, %s99
      %s100 = sphi 0, %s97
      %s101 = sphi 0, %s100
      %s117 = sphi 0, %s101
    $region4: #{tpu_custom_call.1} parent=1 // loop_header_branch
      %20 = sbr.rel (%p18) target = $region8
    $region5: #{tpu_custom_call.1} parent=1 // loop_body
      %s22 = ssub.s32 %s17, 1
      %s23 = ssub.s32 %s17, 2
      %s30 = sadd.s32 1, %s25
      %p31 = scmp.ge.s32.totalorder %s30, 1
      %s32 = scalar_select %p31, 0, %s30
      %s33 = sadd.s32 1, %s24
      %s34 = scalar_select %p31, %s33, %s24
      %p35 = scmp.ge.s32.totalorder %s34, 2
      %s36 = scalar_select %p35, 0, %s34
      %s37 = ssub.s32 %s24, %s36
      %s38 = ssub.s32 %s25, %s32
      %s39 = sor.u32 %s37, %s38
      %p40 = scmp.eq.s32.totalorder %s39, 0
      %s42 = sadd.s32 %s41, 1
      %s43 = scalar_select %p40, %s41, %s42
      %p46 = pneg %p40
      %p47 = scmp.eq.s32.totalorder %s17, 1
      %p48 = por %p46, %p47
      %p49 = scmp.ne.s32.totalorder %s41, %s44
      %p50 = scmp.eq.s32.totalorder %s17, 0
      %p51 = por %p49, %p50
      %p52 = scmp.ne.s32.totalorder %s41, %s44
      %p53 = scmp.eq.s32.totalorder %s22, 1
      %p54 = por %p52, %p53
      %p55 = scmp.ne.s32.totalorder %s44, %s45
      %p56 = scmp.eq.s32.totalorder %s22, 0
      %p57 = por %p55, %p56
      %p58 = scmp.ne.s32.totalorder %s44, %s45
      %p59 = scmp.eq.s32.totalorder %s23, 1
      %p60 = por %p58, %p59
      %p62 = scmp.ne.s32.totalorder %s45, %s61
      %p63 = scmp.eq.s32.totalorder %s23, 0
      %p64 = por %p62, %p63
      %s65 = ssub.s32 %s24, %s36
      %s66 = ssub.s32 %s25, %s32
      %s67 = sor.u32 %s65, %s66
      %p68 = scmp.eq.s32.totalorder %s67, 0
      %s70 = sadd.s32 %s69, 1
      %s71 = scalar_select %p68, %s69, %s70
      %p74 = pneg %p68
      %p75 = scmp.eq.s32.totalorder %s17, 1
      %p76 = por %p74, %p75
      %p77 = scmp.ne.s32.totalorder %s69, %s72
      %p78 = scmp.eq.s32.totalorder %s17, 0
      %p79 = por %p77, %p78
      %p80 = scmp.ne.s32.totalorder %s69, %s72
      %p81 = scmp.eq.s32.totalorder %s22, 1
      %p82 = por %p80, %p81
      %p83 = scmp.ne.s32.totalorder %s72, %s73
      %p84 = scmp.eq.s32.totalorder %s22, 0
      %p85 = por %p83, %p84
      %p86 = scmp.ne.s32.totalorder %s72, %s73
      %p87 = scmp.eq.s32.totalorder %s23, 1
      %p88 = por %p86, %p87
      %p90 = scmp.ne.s32.totalorder %s73, %s89
      %p91 = scmp.eq.s32.totalorder %s23, 0
      %p92 = por %p90, %p91
      %s93 = ssub.s32 %s24, %s36
      %s94 = ssub.s32 %s25, %s32
      %s95 = sor.u32 %s93, %s94
      %p96 = scmp.eq.s32.totalorder %s95, 0
      %s98 = sadd.s32 %s97, 1
      %s99 = scalar_select %p96, %s97, %s98
      %p102 = pneg %p96
      %p103 = scmp.eq.s32.totalorder %s17, 1
      %p104 = por %p102, %p103
      %p105 = scmp.ne.s32.totalorder %s97, %s100
      %p106 = scmp.eq.s32.totalorder %s17, 0
      %p107 = por %p105, %p106
      %p108 = scmp.ne.s32.totalorder %s97, %s100
      %p109 = scmp.eq.s32.totalorder %s22, 1
      %p110 = por %p108, %p109
      %p111 = scmp.ne.s32.totalorder %s100, %s101
      %p112 = scmp.eq.s32.totalorder %s22, 0
      %p113 = por %p111, %p112
      %p114 = scmp.ne.s32.totalorder %s100, %s101
      %p115 = scmp.eq.s32.totalorder %s23, 1
      %p116 = por %p114, %p115
      %p118 = scmp.ne.s32.totalorder %s101, %s117
      %p119 = scmp.eq.s32.totalorder %s23, 0
      %p120 = por %p118, %p119
      %p121 = scmp.le.s32.totalorder 1, %s17
      %p122 = scmp.lt.s32.totalorder %s17, 3
      %p123 = pnand %p121, %p122
      %p124 = pneg %p123
      // Predicated region
      $region9: #{tpu_custom_call.1} parent=5 // pred_check
        _
      $region10: #{tpu_custom_call.1} parent=5 // pred_check_branch
        %126 = sbr.rel (%p123) target = $region12
      $region11: #{tpu_custom_call.1} parent=5 // pred_region
        %s127 = ssub.s32 %s17, 1
      $region12: #{tpu_custom_call.1} parent=5 // pred_fallthru
        _
      %p128 = scmp.lt.s32.totalorder %s17, 2
      // Predicated region
      $region13: #{tpu_custom_call.1} parent=5 // pred_check
        %p129 = pneg %p128
      $region14: #{tpu_custom_call.1} parent=5 // pred_check_branch
        %131 = sbr.rel (%p129) target = $region16
      $region15: #{tpu_custom_call.1} parent=5 // pred_region
        // Predicated region
        $region17: #{tpu_custom_call.1} parent=15 // pred_check
          %p132 = pneg %p51
        $region18: #{tpu_custom_call.1} parent=15 // pred_check_branch
          %134 = sbr.rel (%p132) target = $region20
        $region19: #{tpu_custom_call.1} parent=15 // pred_region
          %s135 = sand.u32 %s41, 1
          %s136 = scalar_lea.sflag [#allocation3], %s135
          %s137 = sand.u32 %s41, 1
          %s138 = smul.addr %s137, 24
          %s139 = scalar_lea.vmem [#allocation2], %s138
          %s141 = ssub.s32 384, 384
          %142 = vsyncadd %s136, %s141
          %s143 = smul.addr %s24, 3
          %s144 = sadd.s32 %s25, %s143
          %s145 = smul.addr %s144, 128
          %s146 = scalar_lea.hbm %s0, %s145
          %s147 = sshll.u32 %s139, 4
          %s148 = int_to_ptr.vmem [resolvable:$true] %s147
          %153 = dma.hbm_to_vmem [thread:$0]  %s146, 384, %s148, %s136, 128, 128, 8
        $region20: #{tpu_custom_call.1} parent=15 // pred_fallthru
          _
        // Predicated region
        $region21: #{tpu_custom_call.1} parent=15 // pred_check
          %p154 = pneg %p79
        $region22: #{tpu_custom_call.1} parent=15 // pred_check_branch
          %156 = sbr.rel (%p154) target = $region24
        $region23: #{tpu_custom_call.1} parent=15 // pred_region
          %s157 = sand.u32 %s69, 1
          %s158 = scalar_lea.sflag [#allocation6], %s157
          %s159 = sand.u32 %s69, 1
          %s160 = smul.addr %s159, 8
          %s161 = scalar_lea.vmem [#allocation5], %s160
          %s163 = ssub.s32 128, 128
          %164 = vsyncadd %s158, %s163
          %s165 = sadd.s32 %s25, %s24
          %s166 = smul.addr %s165, 128
          %s167 = scalar_lea.hbm %s1, %s166
          %s169 = sshll.u32 %s161, 4
          %s170 = int_to_ptr.vmem [resolvable:$true] %s169
          %172 = dma.hbm_to_vmem [thread:$0]  %s167, 128, %s170, %s158
        $region24: #{tpu_custom_call.1} parent=15 // pred_fallthru
          _
      $region16: #{tpu_custom_call.1} parent=5 // pred_fallthru
        _
      %p173 = scmp.le.s32.totalorder 1, %s17
      %p174 = scmp.lt.s32.totalorder %s17, 3
      %p175 = pnand %p173, %p174
      %p176 = pneg %p175
      // Predicated region
      $region25: #{tpu_custom_call.1} parent=5 // pred_check
        _
      $region26: #{tpu_custom_call.1} parent=5 // pred_check_branch
        %178 = sbr.rel (%p175) target = $region28
      $region27: #{tpu_custom_call.1} parent=5 // pred_region
        %s179 = ssub.s32 %s17, 1
        %s180 = sand.u32 %s44, 1
        %s181 = scalar_lea.sflag [#allocation3], %s180
        %s182 = sand.u32 %s44, 1
        %s183 = smul.addr %s182, 24
        %s184 = scalar_lea.vmem [#allocation2], %s183
        // Predicated region
        $region29: #{tpu_custom_call.1} parent=27 // pred_check
          %p185 = pneg %p57
        $region30: #{tpu_custom_call.1} parent=27 // pred_check_branch
          %187 = sbr.rel (%p185) target = $region32
        $region31: #{tpu_custom_call.1} parent=27 // pred_region
          %188 = dma.done %s181, 384
        $region32: #{tpu_custom_call.1} parent=27 // pred_fallthru
          _
        %s189 = sand.u32 %s72, 1
        %s190 = scalar_lea.sflag [#allocation6], %s189
        %s191 = sand.u32 %s72, 1
        %s192 = smul.addr %s191, 8
        %s193 = scalar_lea.vmem [#allocation5], %s192
        // Predicated region
        $region33: #{tpu_custom_call.1} parent=27 // pred_check
          %p194 = pneg %p85
        $region34: #{tpu_custom_call.1} parent=27 // pred_check_branch
          %196 = sbr.rel (%p194) target = $region36
        $region35: #{tpu_custom_call.1} parent=27 // pred_region
          %197 = dma.done %s190, 128
        $region36: #{tpu_custom_call.1} parent=27 // pred_fallthru
          _
        %s198 = sand.u32 %s44, 1
        %s199 = scalar_lea.sflag [#allocation3], %s198
        %s200 = sand.u32 %s44, 1
        %s201 = smul.addr %s200, 24
        %s202 = scalar_lea.vmem [#allocation2], %s201
        %p203 = pneg %p57
        %p204 = pneg %p54
        %s205 = sand.u32 %s72, 1
        %s206 = scalar_lea.sflag [#allocation6], %s205
        %s207 = sand.u32 %s72, 1
        %s208 = smul.addr %s207, 8
        %s209 = scalar_lea.vmem [#allocation5], %s208
        %p210 = pneg %p85
        %p211 = pneg %p82
        %p212 = pneg %p113
        %p213 = pneg %p110
        %s214 = sand.u32 %s100, 1
        %s215 = scalar_lea.sflag [#allocation4], %s214
        %s216 = sand.u32 %s100, 1
        %s217 = smul.addr %s216, 8
        %s218 = scalar_lea.vmem [#allocation7], %s217
        %v219 = vld [vmem:[%s184] sm:$0xff]
        %v220 = vld [vmem:[%s184 + $0x8] sm:$0xff]
        %v221 = vld [vmem:[%s184 + $0x10] sm:$0xff]
        %v222 = vld [vmem:[%s193] sm:$0xff]
        %v223 = vmax.f32 %v219, %v220
        %v224 = vmax.f32 %v223, %v221
        %v225 = vsub.f32 %v219, %v224
        %v226 = vmul.f32 %v225, 1.442695
        %v227 = vpow.pop %v226
        %v228 = vsub.f32 %v220, %v224
        %v229 = vmul.f32 %v228, 1.442695
        %v230 = vpow.pop %v229
        %v231 = vsub.f32 %v221, %v224
        %v232 = vmul.f32 %v231, 1.442695
        %v233 = vpow.pop %v232
        %v234 = vadd.f32 %v227, %v230
        %v235 = vadd.f32 %v234, %v233
        %v236 = vrcp.pop %v235
        %vm237 = vcmp.ne.s32.totalorder %v222, 4294967196
        %v238 = vsel %vm237, 1, 0
        %v239 = vcvt.s32.f32 %v238
        %v240 = vmul.f32 %v227, %v236
        %v241 = vmul.f32 %v240, %v239
        %v242 = vmul.f32 %v230, %v236
        %v243 = vmul.f32 %v242, %v239
        %v244 = vmul.f32 %v233, %v236
        %v245 = vmul.f32 %v244, %v239
        %v246 = vmax.f32 %v241, %v243
        %v247 = vmax.f32 %v246, %v245
        %v248 = vsub.f32 %v241, %v247
        %v249 = vmul.f32 %v248, 1.442695
        %v250 = vpow.pop %v249
        %v251 = vsub.f32 %v243, %v247
        %v252 = vmul.f32 %v251, 1.442695
        %v253 = vpow.pop %v252
        %v254 = vsub.f32 %v245, %v247
        %v255 = vmul.f32 %v254, 1.442695
        %v256 = vpow.pop %v255
        %v257 = vadd.f32 %v250, %v253
        %v258 = vadd.f32 %v257, %v256
        %v259 = vrcp.pop %v258
        %v260 = vsel %vm237, %v222, 0
        %vm261 = vcmp.eq.s32.totalorder %v260, 0
        %vm262 = vcmp.eq.s32.totalorder %v260, 1
        %v263 = vsel %vm262, %v253, %v256
        %v264 = vsel %vm261, %v250, %v263
        %v265 = vmul.f32 %v264, %v259
        %v266 = vsub.f32 1.0, %v265
        %v267 = vmul.f32 %v266, %v266
        %v268 = vmul.f32 %v267, 0.25
        %v269 = vlog2.pop %v265
        %v270 = vmul.f32 %v269, 0.6931472
        %v271 = vsub.f32 0.0, %v270
        %v272 = vmul.f32 %v268, %v271
        %v273 = vlaneseq
        %v274 = vshrl.u32 %v273, 7
        %v275 = vlaneseq
        %v276 = vand.u32 %v275, 127
        %s277 = smul.u32 %s27, 8
        %v278 = vstv %s277
        %v279 = vadd.s32 %v278, %v274
        %v280 = vmul.u32 %v279, 128
        %v281 = vadd.s32 %v280, %v276
        %vm282 = vcmp.lt.s32.totalorder %v281, 256
        %v283 = vsel %vm282, %v272, 0.0
        %v284 = vadd.f32 %v283, 0.0
        %285 = vst [vmem:[%s218] sm:$0xff] %v284
        %s286 = sand.u32 %s100, 1
        %s287 = scalar_lea.sflag [#allocation4], %s286
        %s288 = sand.u32 %s100, 1
        %s289 = smul.addr %s288, 8
        %s290 = scalar_lea.vmem [#allocation7], %s289
        // Predicated region
        $region37: #{tpu_custom_call.1} parent=27 // pred_check
          %p291 = pneg %p110
        $region38: #{tpu_custom_call.1} parent=27 // pred_check_branch
          %293 = sbr.rel (%p291) target = $region40
        $region39: #{tpu_custom_call.1} parent=27 // pred_region
          %s295 = ssub.s32 128, 128
          %296 = vsyncadd %s287, %s295
          %s297 = sadd.s32 %s27, %s26
          %s298 = smul.addr %s297, 128
          %s299 = scalar_lea.hbm %s2, %s298
          %s301 = sshll.u32 %s290, 4
          %s302 = int_to_ptr.vmem [resolvable:$true] %s301
          %304 = dma.vmem_to_hbm [thread:$0]  %s302, 128, %s299, %s287
        $region40: #{tpu_custom_call.1} parent=27 // pred_fallthru
          _
      $region28: #{tpu_custom_call.1} parent=5 // pred_fallthru
        _
      %p305 = scmp.le.s32.totalorder 2, %s17
      // Predicated region
      $region41: #{tpu_custom_call.1} parent=5 // pred_check
        %p306 = pneg %p305
      $region42: #{tpu_custom_call.1} parent=5 // pred_check_branch
        %308 = sbr.rel (%p306) target = $region44
      $region43: #{tpu_custom_call.1} parent=5 // pred_region
        %s309 = ssub.s32 %s17, 2
        // Predicated region
        $region45: #{tpu_custom_call.1} parent=43 // pred_check
          %p310 = pneg %p116
        $region46: #{tpu_custom_call.1} parent=43 // pred_check_branch
          %312 = sbr.rel (%p310) target = $region48
        $region47: #{tpu_custom_call.1} parent=43 // pred_region
          %s313 = sand.u32 %s101, 1
          %s314 = scalar_lea.sflag [#allocation4], %s313
          %s315 = sand.u32 %s101, 1
          %s316 = smul.addr %s315, 8
          %s317 = scalar_lea.vmem [#allocation7], %s316
          %318 = dma.done %s314, 128
        $region48: #{tpu_custom_call.1} parent=43 // pred_fallthru
          _
      $region44: #{tpu_custom_call.1} parent=5 // pred_fallthru
        _
    $region6: #{tpu_custom_call.1} parent=1 // loop_footer
      %s21 = sadd.s32 1, %s17
    $region7: #{tpu_custom_call.1} parent=1 // loop_footer_branch
      %16 = sbr.rel target = $region3
    $region8: #{tpu_custom_call.1} parent=1 // loop_exit
      _
    %319 = vsyncpa [#allocation3], 1
    %s320 = scalar_lea.sflag [#allocation3], 1
    %321 = vsyncpa %s320, 1
    %322 = vsyncpa [#allocation6], 1
    %s323 = scalar_lea.sflag [#allocation6], 1
    %324 = vsyncpa %s323, 1
    %325 = vsyncpa [#allocation4], 1
    %s326 = scalar_lea.sflag [#allocation4], 1
    %327 = vsyncpa %s326, 1

</llo_original>
